<compile_context>
chip_gen: v7x
topology: tpu7x:2x2x1
jax: 0.10.0
libtpu: 0.0.40
codegen_flags: <defaults>
</compile_context>

<pallas_src>
import math

import jax
import jax.numpy as jnp
from jax import lax
from jax.experimental import pallas as pl
from jax.experimental.pallas import tpu as pltpu

# CLIP stores logit_scale as a log-parameter; forward applies .exp().
DEFAULT_LOG_LOGIT_SCALE = math.log(1.0 / 0.07)


def _round_up(x, m):
    return (x + m - 1) // m * m


def _prompts_kernel(x_ref, w_ref, o_ref):
    """One row tile: MXU matmul against pre-scaled W, 2-class softmax.

    x_ref: (tm, D)  streaming tile of image features (native dtype)
    w_ref: (2, D)   pre-normalized, logit-scale-folded text features (resident)
    o_ref: (2, tm)  lane-dense class probabilities (f32)
    """
    # logits = (scale * W/||W||) @ X.T -> (2, tm).  Contracting the LAST dim of
    # both operands (q.kT style) lowers without an XLU transpose of the X tile.
    logits = lax.dot_general(
        w_ref[...], x_ref[...], (((1,), (1,)), ((), ())),
        preferred_element_type=jnp.float32)

    # 2-class softmax == sigmoid of the logit difference (EUP slot, no divide,
    # no lane-sparse reductions).  Write the two rows directly: two plain
    # full-lane vst streams, no sublane-concat relayout.
    d = logits[0:1, :] - logits[1:2, :]          # (1, tm) f32
    p0 = jax.nn.sigmoid(d)
    o_ref[0:1, :] = p0.astype(o_ref.dtype)
    o_ref[1:2, :] = (1.0 - p0).astype(o_ref.dtype)


def prompts_forward(x, text_features, log_logit_scale=DEFAULT_LOG_LOGIT_SCALE, *,
                    tm=1024, dimension_semantics=("parallel",),
                    vmem_limit_bytes=None):
    """x: (B, N, D) image features; text_features: (2, D). Returns (B*N, 2) f32.

    tm: row-tile size (multiple of 128).  1024 hides the ~0.35us per-step
    overhead on all generations (f32: 2 MiB tile, 4 MiB double-buffered).
    v7x: consider tm=2048 and/or core-parallel dimension semantics so both
    TensorCores issue DMAs; v5e: keep tm <= 2048 (f32) at the default scoped
    VMEM limit.
    """
    B, N, D = x.shape
    M = B * N
    xf = x.reshape(M, D)                       # native dtype, reshape is free

    # Hoisted (tiny 2xD): normalize text features, fold in logit_scale.exp(),
    # and match X's dtype so the MXU sees one input precision.
    tf32 = text_features.astype(jnp.float32)
    scale = jnp.exp(jnp.asarray(log_logit_scale, jnp.float32))
    nor = jnp.linalg.norm(tf32, axis=-1, keepdims=True)
    w = (scale * (tf32 / nor)).astype(xf.dtype)                     # (2, D)

    # Row tile: multiple of 128 (lane-dense (2, tm) output block), clamped so
    # tiny inputs don't over-allocate.
    tm_eff = min(tm, _round_up(M, 128))
    tm_eff = max(128, _round_up(tm_eff, 128))
    n_tiles = pl.cdiv(M, tm_eff)               # ragged last block, no jnp.pad

    grid_spec = pltpu.PrefetchScalarGridSpec(
        num_scalar_prefetch=0,
        grid=(n_tiles,),
        in_specs=[
            pl.BlockSpec((tm_eff, D), lambda i: (i, 0)),   # streaming X tile
            pl.BlockSpec((2, D), lambda i: (0, 0)),        # resident text feats
        ],
        out_specs=pl.BlockSpec((2, tm_eff), lambda i: (0, i)),  # lane-dense out
    )

    # Advisory cost: purely HBM-bound on the X stream.
    itemsize = jnp.dtype(xf.dtype).itemsize
    cost = pl.CostEstimate(
        flops=2 * M * D * 2,
        transcendentals=M,
        bytes_accessed=M * D * itemsize + 2 * D * itemsize + 2 * M * 4,
    )

    out_t = pl.pallas_call(
        _prompts_kernel,
        out_shape=jax.ShapeDtypeStruct((2, M), jnp.float32),
        grid_spec=grid_spec,
        compiler_params=pltpu.CompilerParams(
            dimension_semantics=tuple(dimension_semantics),
            vmem_limit_bytes=vmem_limit_bytes),
        cost_estimate=cost,
    )(xf, w)

    # (2, M) -> (M, 2), matching torch.cat([...], dim=0) layout.
    return out_t.T


def prompts_forward_ref(x, text_features, log_logit_scale=DEFAULT_LOG_LOGIT_SCALE):
    """Pure-JAX reference mirroring the PyTorch loop."""
    B, N, D = x.shape
    xf = x.reshape(B * N, D).astype(jnp.float32)
    nor = jnp.linalg.norm(text_features, axis=-1, keepdims=True)
    w = text_features / nor
    logits = math.exp(log_logit_scale) * (xf @ w.T)
    return jax.nn.softmax(logits, axis=-1)


if __name__ == "__main__":
    key = jax.random.PRNGKey(0)
    k_tf, k_x = jax.random.split(key)

    # text_features: nn.Parameter(2, 512) with xavier_normal_ init
    C, D = 2, 512
    xavier_std = math.sqrt(2.0 / (C + D))
    text_features = xavier_std * jax.random.normal(k_tf, (C, D), dtype=jnp.float32)

    # image features: batch of B items, each with N feature rows of dim 512
    B, N = 2, 8
    x = jax.random.normal(k_x, (B, N, D), dtype=jnp.float32)

    ref = prompts_forward_ref(x, text_features)

    # f32 path (exact dtype of the reference module)
    out = jax.block_until_ready(prompts_forward(x, text_features))
    assert out.shape == (B * N, 2), out.shape
    assert jnp.allclose(out, ref, atol=1e-5, rtol=1e-5), \
        float(jnp.max(jnp.abs(out - ref)))

    # bf16 path (native-dtype streaming: half the HBM traffic; f32 accumulate)
    out_bf = jax.block_until_ready(
        prompts_forward(x.astype(jnp.bfloat16), text_features))
    assert out_bf.shape == (B * N, 2), out_bf.shape
    assert jnp.allclose(out_bf, ref, atol=5e-2), \
        float(jnp.max(jnp.abs(out_bf - ref)))

    print("KERNEL_OK")
</pallas_src>

<mosaic_0001>
module attributes {stable_mosaic.version = 11 : i64} {
  func.func @_prompts_kernel(%arg0: i32, %arg1: memref<128x512xf32, #tpu.memory_space<vmem>>, %arg2: memref<2x512xf32, #tpu.memory_space<vmem>>, %arg3: memref<2x128xf32, #tpu.memory_space<vmem>>) attributes {dimension_semantics = [#tpu.dimension_semantics<parallel>], iteration_bounds = array<i64: 1>, scalar_prefetch = 0 : i64, scratch_operands = 0 : i64, tpu.core_type = #tpu.core_type<tc>, window_params = [{transform_indices = @transform_0, window_bounds = array<i64: 128, 512>}, {pipeline_mode = #tpu.pipeline_mode<synchronous>, transform_indices = @transform_1, window_bounds = array<i64: 2, 512>}, {transform_indices = @transform_2, window_bounds = array<i64: 2, 128>}]} {
    %c0 = arith.constant 0 : index
    %c0_0 = arith.constant 0 : index
    %0 = vector.load %arg2[%c0, %c0_0] : memref<2x512xf32, #tpu.memory_space<vmem>>, vector<2x512xf32>
    %c0_1 = arith.constant 0 : index
    %c0_2 = arith.constant 0 : index
    %1 = vector.load %arg1[%c0_1, %c0_2] : memref<128x512xf32, #tpu.memory_space<vmem>>, vector<128x512xf32>
    %cst = arith.constant dense<0.000000e+00> : vector<2x128xf32>
    %2 = tpu.matmul %0, %1, %cst {dimension_numbers = #tpu.dot_dimension_numbers<[1], [1], [0], [0], [0, 0, 1, 0], [], []>} : vector<2x512xf32>, vector<128x512xf32>, vector<2x128xf32> -> vector<2x128xf32>
    %3 = vector.extract_strided_slice %2 {offsets = [0, 0], sizes = [1, 128], strides = [1, 1]} : vector<2x128xf32> to vector<1x128xf32>
    %4 = vector.extract_strided_slice %2 {offsets = [1, 0], sizes = [1, 128], strides = [1, 1]} : vector<2x128xf32> to vector<1x128xf32>
    %5 = arith.subf %3, %4 : vector<1x128xf32>
    %6 = arith.negf %5 : vector<1x128xf32>
    %7 = math.exp %6 : vector<1x128xf32>
    %cst_3 = arith.constant 1.000000e+00 : f32
    %8 = vector.broadcast %cst_3 : f32 to vector<1x128xf32>
    %9 = arith.addf %8, %7 : vector<1x128xf32>
    %10 = arith.divf %8, %9 : vector<1x128xf32>
    %c0_4 = arith.constant 0 : index
    %c0_5 = arith.constant 0 : index
    %11 = vector.load %arg3[%c0_4, %c0_5] : memref<2x128xf32, #tpu.memory_space<vmem>>, vector<1x128xf32>
    tpu.vector_store %arg3[%c0_4, %c0_5], %10 {strides = array<i32>} : memref<2x128xf32, #tpu.memory_space<vmem>>, vector<1x128xf32>,
    %cst_6 = arith.constant 1.000000e+00 : f32
    %12 = vector.broadcast %cst_6 : f32 to vector<1x128xf32>
    %13 = arith.subf %12, %10 : vector<1x128xf32>
    %c1 = arith.constant 1 : index
    %c0_7 = arith.constant 0 : index
    %14 = vector.load %arg3[%c1, %c0_7] : memref<2x128xf32, #tpu.memory_space<vmem>>, vector<1x128xf32>
    tpu.vector_store %arg3[%c1, %c0_7], %13 {strides = array<i32>} : memref<2x128xf32, #tpu.memory_space<vmem>>, vector<1x128xf32>,
    return
  }
  func.func @transform_0(%arg0: i32) -> (i32, i32) {
    %c0_i32 = arith.constant 0 : i32
    %c0_i32_0 = arith.constant 0 : i32
    return %arg0, %c0_i32 : i32, i32
  }
  func.func @transform_1(%arg0: i32) -> (i32, i32) {
    %c0_i32 = arith.constant 0 : i32
    %c0_i32_0 = arith.constant 0 : i32
    %c0_i32_1 = arith.constant 0 : i32
    return %c0_i32, %c0_i32_0 : i32, i32
  }
  func.func @transform_2(%arg0: i32) -> (i32, i32) {
    %c0_i32 = arith.constant 0 : i32
    %c0_i32_0 = arith.constant 0 : i32
    return %c0_i32, %arg0 : i32, i32
  }
}

</mosaic_0001>

<llo_original>
// kernel: tpu_custom_call.1
$region0: #{tpu_custom_call.1}
  #allocation0 [shape = 'u32[]', space=smem, size = 0x4, offset = 0x4, fixed_abs, tag = 'smem constant byte address 0x4 - core index']
  #allocation1 [shape = 'u32[144,128]{1,0:T(1,128)}', space=vmem, size = 0x12000, scoped, tag = 'internal scratch']
  %s0 = inlined_call_operand.hbm [shape: f32[16,512], index: 0, kind: input, shape index: {}]
  %s1 = inlined_call_operand.hbm [shape: f32[2,512], index: 1, kind: input, shape index: {}]
  %s2 = inlined_call_operand.hbm [shape: f32[2,16], index: 2, kind: output, shape index: {}]
  %s3 = sld [smem:[#allocation0]]
  $region26: #{tpu_custom_call.1} parent=0
    _
  %s5 = ssub.s32 1, %s3
  %s6 = scalar_select 0, %s5, %s3
  $region1: #{tpu_custom_call.1} parent=0
    #allocation2 [shape = 'u8[262144]{0}', space=vmem, size = 0x40000, scoped, tag = 'input window, operand 0, single buffered']
    #allocation3 [shape = 's32[1]{0}', space=sflag, size = 0x4, scoped, tag = 'scoped memory for tpu_custom_call.1']
    #allocation4 [shape = 's32[1]{0}', space=sflag, size = 0x4, scoped, tag = 'scoped memory for tpu_custom_call.1']
    #allocation5 [shape = 'u8[4096]{0}', space=vmem, size = 0x1000, scoped, tag = 'input window, operand 1, single buffered']
    #allocation6 [shape = 's32[1]{0}', space=sflag, size = 0x4, scoped, tag = 'scoped memory for tpu_custom_call.1']
    #allocation7 [shape = 'u8[1024]{0}', space=vmem, size = 0x400, scoped, tag = 'output window, operand 0, single buffered']
    %7 = vsyncpa [#allocation3], 0
    %8 = vsyncpa [#allocation6], 0
    %9 = vsyncpa [#allocation4], 0
    // Predicated region
    $region2: #{tpu_custom_call.1} parent=1 // pred_check
      _
    $region3: #{tpu_custom_call.1} parent=1 // pred_check_branch
      %11 = sbr.rel (0) target = $region5
    $region4: #{tpu_custom_call.1} parent=1 // pred_region
      %s13 = ssub.s32 8192, 1024
      %14 = vsyncadd [#allocation3], %s13
      %s15 = sshll.u32 [#allocation2], 4
      %s16 = int_to_ptr.vmem [resolvable:$true] %s15
      %21 = dma.hbm_to_vmem [thread:$0]  %s0, 1024, %s16, [#allocation3], 512, 512, 32
    $region5: #{tpu_custom_call.1} parent=1 // pred_fallthru
      _
    // Predicated region
    $region6: #{tpu_custom_call.1} parent=1 // pred_check
      _
    $region7: #{tpu_custom_call.1} parent=1 // pred_check_branch
      %23 = sbr.rel (0) target = $region9
    $region8: #{tpu_custom_call.1} parent=1 // pred_region
      %s25 = ssub.s32 128, 128
      %26 = vsyncadd [#allocation6], %s25
      %s28 = sshll.u32 [#allocation5], 4
      %s29 = int_to_ptr.vmem [resolvable:$true] %s28
      %31 = dma.hbm_to_vmem [thread:$0]  %s1, 128, %s29, [#allocation6]
    $region9: #{tpu_custom_call.1} parent=1 // pred_fallthru
      _
    // Predicated region
    $region10: #{tpu_custom_call.1} parent=1 // pred_check
      _
    $region11: #{tpu_custom_call.1} parent=1 // pred_check_branch
      %33 = sbr.rel (0) target = $region13
    $region12: #{tpu_custom_call.1} parent=1 // pred_region
      %34 = dma.done [#allocation3], 8192
    $region13: #{tpu_custom_call.1} parent=1 // pred_fallthru
      _
    // Predicated region
    $region14: #{tpu_custom_call.1} parent=1 // pred_check
      _
    $region15: #{tpu_custom_call.1} parent=1 // pred_check_branch
      %36 = sbr.rel (0) target = $region17
    $region16: #{tpu_custom_call.1} parent=1 // pred_region
      %37 = dma.done [#allocation6], 128
    $region17: #{tpu_custom_call.1} parent=1 // pred_fallthru
      _
    %v38 = vld [vmem:[#allocation5] sm:$0xff]
    %v39 = vld [vmem:[#allocation2] sm:$0xff]
    %v40 = vld [vmem:[#allocation2 + $0x8] sm:$0xff]
    %v41 = vld [vmem:[#allocation2 + $0x10] sm:$0xff]
    %v42 = vld [vmem:[#allocation2 + $0x18] sm:$0xff]
    %v43 = vld [vmem:[#allocation2 + $0x20] sm:$0xff]
    %v44 = vld [vmem:[#allocation2 + $0x28] sm:$0xff]
    %v45 = vld [vmem:[#allocation2 + $0x30] sm:$0xff]
    %v46 = vld [vmem:[#allocation2 + $0x38] sm:$0xff]
    %v47 = vld [vmem:[#allocation2 + $0x40] sm:$0xff]
    %v48 = vld [vmem:[#allocation2 + $0x48] sm:$0xff]
    %v49 = vld [vmem:[#allocation2 + $0x50] sm:$0xff]
    %v50 = vld [vmem:[#allocation2 + $0x58] sm:$0xff]
    %v51 = vld [vmem:[#allocation2 + $0x60] sm:$0xff]
    %v52 = vld [vmem:[#allocation2 + $0x68] sm:$0xff]
    %v53 = vld [vmem:[#allocation2 + $0x70] sm:$0xff]
    %v54 = vld [vmem:[#allocation2 + $0x78] sm:$0xff]
    %v55 = vld [vmem:[#allocation2 + $0x80] sm:$0xff]
    %v56 = vld [vmem:[#allocation2 + $0x88] sm:$0xff]
    %v57 = vld [vmem:[#allocation2 + $0x90] sm:$0xff]
    %v58 = vld [vmem:[#allocation2 + $0x98] sm:$0xff]
    %v59 = vld [vmem:[#allocation2 + $0xa0] sm:$0xff]
    %v60 = vld [vmem:[#allocation2 + $0xa8] sm:$0xff]
    %v61 = vld [vmem:[#allocation2 + $0xb0] sm:$0xff]
    %v62 = vld [vmem:[#allocation2 + $0xb8] sm:$0xff]
    %v63 = vld [vmem:[#allocation2 + $0xc0] sm:$0xff]
    %v64 = vld [vmem:[#allocation2 + $0xc8] sm:$0xff]
    %v65 = vld [vmem:[#allocation2 + $0xd0] sm:$0xff]
    %v66 = vld [vmem:[#allocation2 + $0xd8] sm:$0xff]
    %v67 = vld [vmem:[#allocation2 + $0xe0] sm:$0xff]
    %v68 = vld [vmem:[#allocation2 + $0xe8] sm:$0xff]
    %v69 = vld [vmem:[#allocation2 + $0xf0] sm:$0xff]
    %v70 = vld [vmem:[#allocation2 + $0xf8] sm:$0xff]
    %v71 = vld [vmem:[#allocation2 + $0x100] sm:$0xff]
    %v72 = vld [vmem:[#allocation2 + $0x108] sm:$0xff]
    %v73 = vld [vmem:[#allocation2 + $0x110] sm:$0xff]
    %v74 = vld [vmem:[#allocation2 + $0x118] sm:$0xff]
    %v75 = vld [vmem:[#allocation2 + $0x120] sm:$0xff]
    %v76 = vld [vmem:[#allocation2 + $0x128] sm:$0xff]
    %v77 = vld [vmem:[#allocation2 + $0x130] sm:$0xff]
    %v78 = vld [vmem:[#allocation2 + $0x138] sm:$0xff]
    %v79 = vld [vmem:[#allocation2 + $0x140] sm:$0xff]
    %v80 = vld [vmem:[#allocation2 + $0x148] sm:$0xff]
    %v81 = vld [vmem:[#allocation2 + $0x150] sm:$0xff]
    %v82 = vld [vmem:[#allocation2 + $0x158] sm:$0xff]
    %v83 = vld [vmem:[#allocation2 + $0x160] sm:$0xff]
    %v84 = vld [vmem:[#allocation2 + $0x168] sm:$0xff]
    %v85 = vld [vmem:[#allocation2 + $0x170] sm:$0xff]
    %v86 = vld [vmem:[#allocation2 + $0x178] sm:$0xff]
    %v87 = vld [vmem:[#allocation2 + $0x180] sm:$0xff]
    %v88 = vld [vmem:[#allocation2 + $0x188] sm:$0xff]
    %v89 = vld [vmem:[#allocation2 + $0x190] sm:$0xff]
    %v90 = vld [vmem:[#allocation2 + $0x198] sm:$0xff]
    %v91 = vld [vmem:[#allocation2 + $0x1a0] sm:$0xff]
    %v92 = vld [vmem:[#allocation2 + $0x1a8] sm:$0xff]
    %v93 = vld [vmem:[#allocation2 + $0x1b0] sm:$0xff]
    %v94 = vld [vmem:[#allocation2 + $0x1b8] sm:$0xff]
    %v95 = vld [vmem:[#allocation2 + $0x1c0] sm:$0xff]
    %v96 = vld [vmem:[#allocation2 + $0x1c8] sm:$0xff]
    %v97 = vld [vmem:[#allocation2 + $0x1d0] sm:$0xff]
    %v98 = vld [vmem:[#allocation2 + $0x1d8] sm:$0xff]
    %v99 = vld [vmem:[#allocation2 + $0x1e0] sm:$0xff]
    %v100 = vld [vmem:[#allocation2 + $0x1e8] sm:$0xff]
    %v101 = vld [vmem:[#allocation2 + $0x1f0] sm:$0xff]
    %v102 = vld [vmem:[#allocation2 + $0x1f8] sm:$0xff]
    %v104 = vcombine.high %v38, %v38
    %v106 = vunpack.c.l.s4 1983009808
    %v107 = vunpack.c.0.s8 %v106
    %v108 = vlaneseq
    %v109 = vshrl.u32 %v108, 7
    %v110 = vsub.s32 %v107, %v109
    %v111 = vrot.slane %v38, %v110
    %v113 = vunpack.c.l.s4 1983009808
    %v114 = vunpack.c.0.s8 %v113
    %v115 = vlaneseq
    %v116 = vshrl.u32 %v115, 7
    %v117 = vsub.s32 %v114, %v116
    %v118 = vrot.slane %v104, %v117
    %v119 = vcombine.high %v111, %v111
    %v120 = vcombine.high %v118, %v118
    %125 = vmatprep.subr.mxu0 %v40
    %126 = vmatpush1.xpose.msra.mxu0 %v39
    %127 = vmatprep.subr.mxu0 %v44
    %128 = vmatpush1.xpose.msra.mxu0 %v43
    %129 = vmatprep.subr.mxu0 %v48
    %130 = vmatpush1.xpose.msra.mxu0 %v47
    %131 = vmatprep.subr.mxu0 %v52
    %132 = vmatpush1.xpose.msra.mxu0 %v51
    %133 = vmatprep.subr.mxu0 %v56
    %134 = vmatpush1.xpose.msra.mxu0 %v55
    %135 = vmatprep.subr.mxu0 %v60
    %136 = vmatpush1.xpose.msra.mxu0 %v59
    %137 = vmatprep.subr.mxu0 %v64
    %138 = vmatpush1.xpose.msra.mxu0 %v63
    %139 = vmatprep.subr.mxu0 %v68
    %140 = vmatpush1.xpose.msra.mxu0 %v67
    %141 = vmatprep.subr.mxu0 %v72
    %142 = vmatpush1.xpose.msra.mxu0 %v71
    %143 = vmatprep.subr.mxu0 %v76
    %144 = vmatpush1.xpose.msra.mxu0 %v75
    %145 = vmatprep.subr.mxu0 %v80
    %146 = vmatpush1.xpose.msra.mxu0 %v79
    %147 = vmatprep.subr.mxu0 %v84
    %148 = vmatpush1.xpose.msra.mxu0 %v83
    %149 = vmatprep.subr.mxu0 %v88
    %150 = vmatpush1.xpose.msra.mxu0 %v87
    %151 = vmatprep.subr.mxu0 %v92
    %152 = vmatpush1.xpose.msra.mxu0 %v91
    %153 = vmatprep.subr.mxu0 %v96
    %154 = vmatpush1.xpose.msra.mxu0 %v95
    %155 = vmatprep.subr.mxu0 %v100
    %156 = vmatpush1.xpose.msra.mxu0 %v99
    %157 = vmatprep.subr.mxu0 0.0
    %158 = vmatpush1.xpose.msra.mxu0 0.0
    %159 = vmatprep.subr.mxu0 0.0
    %160 = vmatpush1.xpose.msra.mxu0 0.0
    %161 = vmatprep.subr.mxu0 0.0
    %162 = vmatpush1.xpose.msra.mxu0 0.0
    %163 = vmatprep.subr.mxu0 0.0
    %164 = vmatpush1.xpose.msra.mxu0 0.0
    %165 = vmatprep.subr.mxu0 0.0
    %166 = vmatpush1.xpose.msra.mxu0 0.0
    %167 = vmatprep.subr.mxu0 0.0
    %168 = vmatpush1.xpose.msra.mxu0 0.0
    %169 = vmatprep.subr.mxu0 0.0
    %170 = vmatpush1.xpose.msra.mxu0 0.0
    %171 = vmatprep.subr.mxu0 0.0
    %172 = vmatpush1.xpose.msra.mxu0 0.0
    %173 = vmatprep.subr.mxu0 0.0
    %174 = vmatpush1.xpose.msra.mxu0 0.0
    %175 = vmatprep.subr.mxu0 0.0
    %176 = vmatpush1.xpose.msra.mxu0 0.0
    %177 = vmatprep.subr.mxu0 0.0
    %178 = vmatpush1.xpose.msra.mxu0 0.0
    %179 = vmatprep.subr.mxu0 0.0
    %180 = vmatpush1.xpose.msra.mxu0 0.0
    %181 = vmatprep.subr.mxu0 0.0
    %182 = vmatpush1.xpose.msra.mxu0 0.0
    %183 = vmatprep.subr.mxu0 0.0
    %184 = vmatpush1.xpose.msra.mxu0 0.0
    %185 = vmatprep.subr.mxu0 0.0
    %186 = vmatpush1.xpose.msra.mxu0 0.0
    %187 = vmatprep.subr.mxu0 0.0
    %188 = vmatpush1.xpose.msra.mxu0 0.0
    %189 = vmatprep.mubr.f32.mxu0 %v119
    %190 = vmatmul.mubr.f32.gmra.mrb[0].mxu0 %v111
    %v191 = vpop.f32.mrb[0].mxu0
    %v192 = vadd.f32 0.0, %v191
    %v193 = vpop.f32.mrb[0].mxu0
    %194 = vdwg.mxu0
    %195 = vmatprep.subr.mxu0 %v42
    %196 = vmatpush1.xpose.msra.mxu0 %v41
    %197 = vmatprep.subr.mxu0 %v46
    %198 = vmatpush1.xpose.msra.mxu0 %v45
    %199 = vmatprep.subr.mxu0 %v50
    %200 = vmatpush1.xpose.msra.mxu0 %v49
    %201 = vmatprep.subr.mxu0 %v54
    %202 = vmatpush1.xpose.msra.mxu0 %v53
    %203 = vmatprep.subr.mxu0 %v58
    %204 = vmatpush1.xpose.msra.mxu0 %v57
    %205 = vmatprep.subr.mxu0 %v62
    %206 = vmatpush1.xpose.msra.mxu0 %v61
    %207 = vmatprep.subr.mxu0 %v66
    %208 = vmatpush1.xpose.msra.mxu0 %v65
    %209 = vmatprep.subr.mxu0 %v70
    %210 = vmatpush1.xpose.msra.mxu0 %v69
    %211 = vmatprep.subr.mxu0 %v74
    %212 = vmatpush1.xpose.msra.mxu0 %v73
    %213 = vmatprep.subr.mxu0 %v78
    %214 = vmatpush1.xpose.msra.mxu0 %v77
    %215 = vmatprep.subr.mxu0 %v82
    %216 = vmatpush1.xpose.msra.mxu0 %v81
    %217 = vmatprep.subr.mxu0 %v86
    %218 = vmatpush1.xpose.msra.mxu0 %v85
    %219 = vmatprep.subr.mxu0 %v90
    %220 = vmatpush1.xpose.msra.mxu0 %v89
    %221 = vmatprep.subr.mxu0 %v94
    %222 = vmatpush1.xpose.msra.mxu0 %v93
    %223 = vmatprep.subr.mxu0 %v98
    %224 = vmatpush1.xpose.msra.mxu0 %v97
    %225 = vmatprep.subr.mxu0 %v102
    %226 = vmatpush1.xpose.msra.mxu0 %v101
    %227 = vmatprep.subr.mxu0 0.0
    %228 = vmatpush1.xpose.msra.mxu0 0.0
    %229 = vmatprep.subr.mxu0 0.0
    %230 = vmatpush1.xpose.msra.mxu0 0.0
    %231 = vmatprep.subr.mxu0 0.0
    %232 = vmatpush1.xpose.msra.mxu0 0.0
    %233 = vmatprep.subr.mxu0 0.0
    %234 = vmatpush1.xpose.msra.mxu0 0.0
    %235 = vmatprep.subr.mxu0 0.0
    %236 = vmatpush1.xpose.msra.mxu0 0.0
    %237 = vmatprep.subr.mxu0 0.0
    %238 = vmatpush1.xpose.msra.mxu0 0.0
    %239 = vmatprep.subr.mxu0 0.0
    %240 = vmatpush1.xpose.msra.mxu0 0.0
    %241 = vmatprep.subr.mxu0 0.0
    %242 = vmatpush1.xpose.msra.mxu0 0.0
    %243 = vmatprep.subr.mxu0 0.0
    %244 = vmatpush1.xpose.msra.mxu0 0.0
    %245 = vmatprep.subr.mxu0 0.0
    %246 = vmatpush1.xpose.msra.mxu0 0.0
    %247 = vmatprep.subr.mxu0 0.0
    %248 = vmatpush1.xpose.msra.mxu0 0.0
    %249 = vmatprep.subr.mxu0 0.0
    %250 = vmatpush1.xpose.msra.mxu0 0.0
    %251 = vmatprep.subr.mxu0 0.0
    %252 = vmatpush1.xpose.msra.mxu0 0.0
    %253 = vmatprep.subr.mxu0 0.0
    %254 = vmatpush1.xpose.msra.mxu0 0.0
    %255 = vmatprep.subr.mxu0 0.0
    %256 = vmatpush1.xpose.msra.mxu0 0.0
    %257 = vmatprep.subr.mxu0 0.0
    %258 = vmatpush1.xpose.msra.mxu0 0.0
    %259 = vmatprep.mubr.f32.mxu0 %v120
    %260 = vmatmul.mubr.f32.gmra.mrb[0].mxu0 %v118
    %v261 = vpop.f32.mrb[0].mxu0
    %v262 = vadd.f32 %v192, %v261
    %v263 = vpop.f32.mrb[0].mxu0
    %264 = vdwg.mxu0
    %v266 = vrot.slane %v262, 1
    %v268 = vsub.f32 %v262, %v266
    %v269 = vxor.u32 %v268, 2147483648
    %v270 = vmul.f32 %v269, 1.442695
    %v271 = vpow.pop %v270
    %v272 = vadd.f32 %v271, 1.0
    %v273 = vrcp.pop %v272
    %v274 = vmul.f32 1.0, %v273
    %275 = vst [vmem:[#allocation7] sm:$0x1] %v274
    %v276 = vsub.f32 1.0, %v274
    %277 = vst [vmem:[#allocation7 + $0x1] sm:$0x1] %v276
    // Predicated region
    $region18: #{tpu_custom_call.1} parent=1 // pred_check
      _
    $region19: #{tpu_custom_call.1} parent=1 // pred_check_branch
      %279 = sbr.rel (0) target = $region21
    $region20: #{tpu_custom_call.1} parent=1 // pred_region
      %s281 = ssub.s32 32, 32
      %282 = vsyncadd [#allocation4], %s281
      %s284 = sshll.u32 [#allocation7], 4
      %s285 = int_to_ptr.vmem [resolvable:$true] %s284
      %287 = dma.vmem_to_hbm [thread:$0]  %s285, 32, %s2, [#allocation4]
    $region21: #{tpu_custom_call.1} parent=1 // pred_fallthru
      _
    // Predicated region
    $region22: #{tpu_custom_call.1} parent=1 // pred_check
      _
    $region23: #{tpu_custom_call.1} parent=1 // pred_check_branch
      %289 = sbr.rel (0) target = $region25
    $region24: #{tpu_custom_call.1} parent=1 // pred_region
      %290 = dma.done [#allocation4], 32
    $region25: #{tpu_custom_call.1} parent=1 // pred_fallthru
      _
    %291 = vsyncpa [#allocation3], 1
    %292 = vsyncpa [#allocation6], 1
    %293 = vsyncpa [#allocation4], 1

</llo_original>
